<compile_context>
chip_gen: v7x
topology: tpu7x:2x2x1
jax: 0.10.0
libtpu: 0.0.40
codegen_flags: <defaults>
</compile_context>

<pallas_src>
import functools

import jax
import jax.numpy as jnp
from jax.experimental import pallas as pl
from jax.experimental.pallas import tpu as pltpu


def _imageproj_kernel(x_ref, w_ref, b_ref, g_ref, beta_ref, o_ref,
                      *, eps, c_dim, tokens_per_step):
    # One grid step handles `tokens_per_step` extra-context tokens:
    #   x_ref:    (B, E)           f32, resident across the whole grid
    #   w_ref:    (k, E, C)        bf16 token-major weight slab (streamed)
    #   b_ref:    (1, k*C)         f32 bias slice for these tokens
    #   g_ref:    (1, C)           LayerNorm gamma
    #   beta_ref: (1, C)           LayerNorm beta
    #   o_ref:    (B, k*C)         lane-dense output slab for these tokens
    x_bf = x_ref[...].astype(jnp.bfloat16)     # tiny (B, E) cast; weight stays bf16
    gamma = g_ref[...]
    beta = beta_ref[...]

    for i in range(tokens_per_step):           # static, small unrolled loop
        w_i = w_ref[i]                         # (E, C) bf16, no upcast
        b_i = b_ref[:, i * c_dim:(i + 1) * c_dim]   # (1, C) f32, lane-aligned slice

        # Linear for this token: bf16 x bf16 -> f32 accumulate on the MXU, + bias.
        y = jnp.dot(x_bf, w_i, preferred_element_type=jnp.float32) + b_i

        # LayerNorm over C (last axis), f32 math: biased variance, eps inside
        # rsqrt (matches torch.nn.LayerNorm).
        mean = jnp.mean(y, axis=-1, keepdims=True)
        centered = y - mean
        var = jnp.mean(centered * centered, axis=-1, keepdims=True)
        y_hat = centered * jax.lax.rsqrt(var + eps)

        o_ref[:, i * c_dim:(i + 1) * c_dim] = (y_hat * gamma + beta).astype(o_ref.dtype)


def prepare_image_proj_params(proj_weight, proj_bias, ln_weight, ln_bias,
                              *, tokens, cross_attention_dim,
                              weight_dtype=jnp.bfloat16):
    """One-time, parameter-load-time repacking (NOT in the per-call hot path):
       torch Linear weight (T*C, E) -> token-major contiguous (T, E, C) bf16 so
       every per-step weight DMA is a single contiguous read; bias / LayerNorm
       params reshaped to 2-D lane-major f32."""
    T, C = tokens, cross_attention_dim
    w = jnp.asarray(proj_weight)                              # (T*C, E)
    E = w.shape[1]
    assert w.shape[0] == T * C
    w_tok = w.reshape(T, C, E).transpose(0, 2, 1).astype(weight_dtype)   # (T, E, C)
    b2 = jnp.asarray(proj_bias).reshape(1, T * C).astype(jnp.float32)    # (1, T*C)
    g2 = jnp.asarray(ln_weight).reshape(1, C).astype(jnp.float32)        # (1, C)
    beta2 = jnp.asarray(ln_bias).reshape(1, C).astype(jnp.float32)       # (1, C)
    return w_tok, b2, g2, beta2


def _choose_tokens_per_step(T, E, C, *, target_tile_bytes=8 << 20):
    """Largest divisor k of T whose bf16 weight slab is <= ~8 MB while keeping
       the grid length >= 2 (so v7x's two TensorCores both get work)."""
    best = 1
    for k in range(1, T + 1):
        if T % k:
            continue
        if k * E * C * 2 > target_tile_bytes:
            continue
        if T // k < 2 and T >= 2:
            continue
        best = max(best, k)
    return best


def image_proj_model(image_embeds, w_tok, b2, g2, beta2,
                     *, eps=1e-5, tokens_per_step=None, out_dtype=jnp.float32):
    """image_embeds: (B, E) f32; w_tok: (T, E, C) bf16 token-major;
       b2: (1, T*C); g2/beta2: (1, C). Returns (B, T, C) in out_dtype (f32)."""
    B, E = image_embeds.shape
    T, E_w, C = w_tok.shape
    assert E_w == E
    assert b2.shape == (1, T * C)
    assert g2.shape == (1, C) and beta2.shape == (1, C)

    if tokens_per_step is None:
        tokens_per_step = _choose_tokens_per_step(T, E, C)
    assert T % tokens_per_step == 0
    k = tokens_per_step
    grid_len = T // k

    # Pipeline depth: triple-buffer the weight stream only when the grid is long
    # enough for it to matter (keeps the demo / short-grid path on the default).
    buffer_count = 3 if grid_len >= 3 else 2
    w_spec_kwargs = {}
    if buffer_count != 2:
        w_spec_kwargs["pipeline_mode"] = pl.Buffered(buffer_count)
    w_spec = pl.BlockSpec((k, E, C), lambda t: (t, 0, 0), **w_spec_kwargs)

    # Scoped-VMEM estimate: only override the default when the buffers would
    # exceed v5e's conservative 16 MiB scoped default. Kept well under v7x's
    # 64 MiB physical VMEM.
    b_rows = max(B, 8)
    est_bytes = (buffer_count * k * E * C * 2        # weight slabs (bf16)
                 + 2 * b_rows * E * 4                # resident x (double-buffered)
                 + 2 * b_rows * k * C * 4            # output slabs
                 + 2 * k * C * 4                     # bias slabs
                 + 4 * C * 4)                        # gamma/beta
    vmem_limit = None
    if est_bytes > (12 << 20):
        vmem_limit = min(int(est_bytes * 1.5), 60 << 20)

    params = {"dimension_semantics": ("parallel",)}
    if vmem_limit is not None:
        params["vmem_limit_bytes"] = vmem_limit

    kernel = functools.partial(_imageproj_kernel, eps=eps, c_dim=C,
                               tokens_per_step=k)

    out2d = pl.pallas_call(
        kernel,
        out_shape=jax.ShapeDtypeStruct((B, T * C), out_dtype),
        grid=(grid_len,),
        in_specs=[
            pl.BlockSpec((B, E), lambda t: (0, 0)),         # x: stays resident
            w_spec,                                         # (k, E, C) contiguous slab
            pl.BlockSpec((1, k * C), lambda t: (0, t)),     # bias slice per step
            pl.BlockSpec((1, C), lambda t: (0, 0)),         # LN gamma
            pl.BlockSpec((1, C), lambda t: (0, 0)),         # LN beta
        ],
        out_specs=pl.BlockSpec((B, k * C), lambda t: (0, t)),   # lane-dense output
        compiler_params=pltpu.CompilerParams(**params),
    )(image_embeds, w_tok, b2, g2, beta2)

    # Free metadata reshape (row-major): (B, T*C) -> (B, T, C).
    return out2d.reshape(B, T, C)


if __name__ == "__main__":
    # Small shapes consistent with the module (lane-aligned for TPU tiling).
    B = 2                      # batch
    E = 128                    # clip_embeddings_dim
    C = 128                    # cross_attention_dim
    T = 4                      # clip_extra_context_tokens

    key = jax.random.PRNGKey(0)
    k_x, k_w, k_b = jax.random.split(key, 3)

    image_embeds = jax.random.normal(k_x, (B, E), dtype=jnp.float32)

    # Deterministic synthetic parameters (torch Linear layout: weight (out, in)).
    proj_weight = jax.random.normal(k_w, (T * C, E), dtype=jnp.float32) * (1.0 / jnp.sqrt(E))
    proj_bias = jax.random.normal(k_b, (T * C,), dtype=jnp.float32) * 0.01
    # LayerNorm default init: weight=1, bias=0.
    ln_weight = jnp.ones((C,), dtype=jnp.float32)
    ln_bias = jnp.zeros((C,), dtype=jnp.float32)

    # One-time parameter repack (token-major transpose + bf16 cast) -- out of the hot path.
    w_tok, b2, g2, beta2 = prepare_image_proj_params(
        proj_weight, proj_bias, ln_weight, ln_bias,
        tokens=T, cross_attention_dim=C)

    out = image_proj_model(image_embeds, w_tok, b2, g2, beta2)
    out = jax.block_until_ready(out)

    # Pure-JAX reference using the SAME bf16-quantized activation and weight the
    # kernel feeds the MXU, so the only delta is f32 accumulation order.
    x_q = image_embeds.astype(jnp.bfloat16).astype(jnp.float32)
    w_q = w_tok.astype(jnp.float32)                                   # (T, E, C)
    y_ref = jnp.einsum("be,tec->btc", x_q, w_q,
                       precision=jax.lax.Precision.HIGHEST)
    y_ref = y_ref + proj_bias.reshape(T, C)[None]
    mu = y_ref.mean(-1, keepdims=True)
    var = ((y_ref - mu) ** 2).mean(-1, keepdims=True)
    y_ref = (y_ref - mu) / jnp.sqrt(var + 1e-5) * ln_weight + ln_bias

    assert out.shape == (B, T, C)
    assert out.dtype == jnp.float32
    max_err = float(jnp.max(jnp.abs(out - y_ref)))
    assert jnp.allclose(out, y_ref, atol=2e-3, rtol=2e-3), max_err
    print("KERNEL_OK")
</pallas_src>

<mosaic_0001>
module attributes {stable_mosaic.version = 11 : i64} {
  func.func @_imageproj_kernel(%arg0: i32, %arg1: memref<2x128xf32, #tpu.memory_space<vmem>>, %arg2: memref<2x128x128xbf16, #tpu.memory_space<vmem>>, %arg3: memref<1x256xf32, #tpu.memory_space<vmem>>, %arg4: memref<1x128xf32, #tpu.memory_space<vmem>>, %arg5: memref<1x128xf32, #tpu.memory_space<vmem>>, %arg6: memref<2x256xf32, #tpu.memory_space<vmem>>) attributes {dimension_semantics = [#tpu.dimension_semantics<parallel>], iteration_bounds = array<i64: 2>, scalar_prefetch = 0 : i64, scratch_operands = 0 : i64, tpu.core_type = #tpu.core_type<tc>, window_params = [{pipeline_mode = #tpu.pipeline_mode<synchronous>, transform_indices = @transform_0, window_bounds = array<i64: 2, 128>}, {transform_indices = @transform_1, window_bounds = array<i64: 2, 128, 128>}, {transform_indices = @transform_2, window_bounds = array<i64: 1, 256>}, {pipeline_mode = #tpu.pipeline_mode<synchronous>, transform_indices = @transform_3, window_bounds = array<i64: 1, 128>}, {pipeline_mode = #tpu.pipeline_mode<synchronous>, transform_indices = @transform_4, window_bounds = array<i64: 1, 128>}, {transform_indices = @transform_5, window_bounds = array<i64: 2, 256>}]} {
    %c0 = arith.constant 0 : index
    %c0_0 = arith.constant 0 : index
    %0 = vector.load %arg1[%c0, %c0_0] : memref<2x128xf32, #tpu.memory_space<vmem>>, vector<2x128xf32>
    %1 = arith.truncf %0 : vector<2x128xf32> to vector<2x128xbf16>
    %c0_1 = arith.constant 0 : index
    %c0_2 = arith.constant 0 : index
    %2 = vector.load %arg4[%c0_1, %c0_2] : memref<1x128xf32, #tpu.memory_space<vmem>>, vector<1x128xf32>
    %c0_3 = arith.constant 0 : index
    %c0_4 = arith.constant 0 : index
    %3 = vector.load %arg5[%c0_3, %c0_4] : memref<1x128xf32, #tpu.memory_space<vmem>>, vector<1x128xf32>
    %c0_5 = arith.constant 0 : index
    %c0_6 = arith.constant 0 : index
    %c0_7 = arith.constant 0 : index
    %4 = vector.load %arg2[%c0_5, %c0_6, %c0_7] : memref<2x128x128xbf16, #tpu.memory_space<vmem>>, vector<1x128x128xbf16>
    %5 = vector.shape_cast %4 : vector<1x128x128xbf16> to vector<128x128xbf16>
    %c0_8 = arith.constant 0 : index
    %c0_9 = arith.constant 0 : index
    %6 = vector.load %arg3[%c0_8, %c0_9] : memref<1x256xf32, #tpu.memory_space<vmem>>, vector<1x128xf32>
    %cst = arith.constant dense<0.000000e+00> : vector<2x128xf32>
    %7 = tpu.matmul %1, %5, %cst {dimension_numbers = #tpu.dot_dimension_numbers<[1], [0], [0], [1], [0, 0, 1, 1], [], []>} : vector<2x128xbf16>, vector<128x128xbf16>, vector<2x128xf32> -> vector<2x128xf32>
    %8 = vector.broadcast %6 : vector<1x128xf32> to vector<2x128xf32>
    %9 = arith.addf %7, %8 : vector<2x128xf32>
    %cst_10 = arith.constant dense<0.000000e+00> : vector<2xf32>
    %10 = vector.multi_reduction <add>, %9, %cst_10 [1] : vector<2x128xf32> to vector<2xf32>
    %11 = vector.shape_cast %10 : vector<2xf32> to vector<2x1xf32>
    %cst_11 = arith.constant 1.280000e+02 : f32
    %12 = vector.broadcast %cst_11 : f32 to vector<2x1xf32>
    %13 = arith.divf %11, %12 : vector<2x1xf32>
    %14 = vector.broadcast %13 : vector<2x1xf32> to vector<2x128xf32>
    %15 = arith.subf %9, %14 : vector<2x128xf32>
    %16 = arith.mulf %15, %15 : vector<2x128xf32>
    %cst_12 = arith.constant dense<0.000000e+00> : vector<2xf32>
    %17 = vector.multi_reduction <add>, %16, %cst_12 [1] : vector<2x128xf32> to vector<2xf32>
    %18 = vector.shape_cast %17 : vector<2xf32> to vector<2x1xf32>
    %cst_13 = arith.constant 1.280000e+02 : f32
    %19 = vector.broadcast %cst_13 : f32 to vector<2x1xf32>
    %20 = arith.divf %18, %19 : vector<2x1xf32>
    %cst_14 = arith.constant 9.99999974E-6 : f32
    %21 = vector.broadcast %cst_14 : f32 to vector<2x1xf32>
    %22 = arith.addf %20, %21 : vector<2x1xf32>
    %23 = math.rsqrt %22 : vector<2x1xf32>
    %24 = vector.broadcast %23 : vector<2x1xf32> to vector<2x128xf32>
    %25 = arith.mulf %15, %24 : vector<2x128xf32>
    %26 = vector.broadcast %2 : vector<1x128xf32> to vector<2x128xf32>
    %27 = arith.mulf %25, %26 : vector<2x128xf32>
    %28 = vector.broadcast %3 : vector<1x128xf32> to vector<2x128xf32>
    %29 = arith.addf %27, %28 : vector<2x128xf32>
    %c0_15 = arith.constant 0 : index
    %c0_16 = arith.constant 0 : index
    %30 = vector.load %arg6[%c0_15, %c0_16] : memref<2x256xf32, #tpu.memory_space<vmem>>, vector<2x128xf32>
    tpu.vector_store %arg6[%c0_15, %c0_16], %29 {strides = array<i32>} : memref<2x256xf32, #tpu.memory_space<vmem>>, vector<2x128xf32>,
    %c1 = arith.constant 1 : index
    %c0_17 = arith.constant 0 : index
    %c0_18 = arith.constant 0 : index
    %31 = vector.load %arg2[%c1, %c0_17, %c0_18] : memref<2x128x128xbf16, #tpu.memory_space<vmem>>, vector<1x128x128xbf16>
    %32 = vector.shape_cast %31 : vector<1x128x128xbf16> to vector<128x128xbf16>
    %c0_19 = arith.constant 0 : index
    %c128 = arith.constant 128 : index
    %33 = vector.load %arg3[%c0_19, %c128] : memref<1x256xf32, #tpu.memory_space<vmem>>, vector<1x128xf32>
    %cst_20 = arith.constant dense<0.000000e+00> : vector<2x128xf32>
    %34 = tpu.matmul %1, %32, %cst_20 {dimension_numbers = #tpu.dot_dimension_numbers<[1], [0], [0], [1], [0, 0, 1, 1], [], []>} : vector<2x128xbf16>, vector<128x128xbf16>, vector<2x128xf32> -> vector<2x128xf32>
    %35 = vector.broadcast %33 : vector<1x128xf32> to vector<2x128xf32>
    %36 = arith.addf %34, %35 : vector<2x128xf32>
    %cst_21 = arith.constant dense<0.000000e+00> : vector<2xf32>
    %37 = vector.multi_reduction <add>, %36, %cst_21 [1] : vector<2x128xf32> to vector<2xf32>
    %38 = vector.shape_cast %37 : vector<2xf32> to vector<2x1xf32>
    %cst_22 = arith.constant 1.280000e+02 : f32
    %39 = vector.broadcast %cst_22 : f32 to vector<2x1xf32>
    %40 = arith.divf %38, %39 : vector<2x1xf32>
    %41 = vector.broadcast %40 : vector<2x1xf32> to vector<2x128xf32>
    %42 = arith.subf %36, %41 : vector<2x128xf32>
    %43 = arith.mulf %42, %42 : vector<2x128xf32>
    %cst_23 = arith.constant dense<0.000000e+00> : vector<2xf32>
    %44 = vector.multi_reduction <add>, %43, %cst_23 [1] : vector<2x128xf32> to vector<2xf32>
    %45 = vector.shape_cast %44 : vector<2xf32> to vector<2x1xf32>
    %cst_24 = arith.constant 1.280000e+02 : f32
    %46 = vector.broadcast %cst_24 : f32 to vector<2x1xf32>
    %47 = arith.divf %45, %46 : vector<2x1xf32>
    %cst_25 = arith.constant 9.99999974E-6 : f32
    %48 = vector.broadcast %cst_25 : f32 to vector<2x1xf32>
    %49 = arith.addf %47, %48 : vector<2x1xf32>
    %50 = math.rsqrt %49 : vector<2x1xf32>
    %51 = vector.broadcast %50 : vector<2x1xf32> to vector<2x128xf32>
    %52 = arith.mulf %42, %51 : vector<2x128xf32>
    %53 = vector.broadcast %2 : vector<1x128xf32> to vector<2x128xf32>
    %54 = arith.mulf %52, %53 : vector<2x128xf32>
    %55 = vector.broadcast %3 : vector<1x128xf32> to vector<2x128xf32>
    %56 = arith.addf %54, %55 : vector<2x128xf32>
    %c0_26 = arith.constant 0 : index
    %c128_27 = arith.constant 128 : index
    %57 = vector.load %arg6[%c0_26, %c128_27] : memref<2x256xf32, #tpu.memory_space<vmem>>, vector<2x128xf32>
    tpu.vector_store %arg6[%c0_26, %c128_27], %56 {strides = array<i32>} : memref<2x256xf32, #tpu.memory_space<vmem>>, vector<2x128xf32>,
    return
  }
  func.func @transform_0(%arg0: i32) -> (i32, i32) {
    %c0_i32 = arith.constant 0 : i32
    %c0_i32_0 = arith.constant 0 : i32
    %c0_i32_1 = arith.constant 0 : i32
    return %c0_i32, %c0_i32_0 : i32, i32
  }
  func.func @transform_1(%arg0: i32) -> (i32, i32, i32) {
    %c0_i32 = arith.constant 0 : i32
    %c0_i32_0 = arith.constant 0 : i32
    %c0_i32_1 = arith.constant 0 : i32
    return %arg0, %c0_i32, %c0_i32_0 : i32, i32, i32
  }
  func.func @transform_2(%arg0: i32) -> (i32, i32) {
    %c0_i32 = arith.constant 0 : i32
    %c0_i32_0 = arith.constant 0 : i32
    return %c0_i32, %arg0 : i32, i32
  }
  func.func @transform_3(%arg0: i32) -> (i32, i32) {
    %c0_i32 = arith.constant 0 : i32
    %c0_i32_0 = arith.constant 0 : i32
    %c0_i32_1 = arith.constant 0 : i32
    return %c0_i32, %c0_i32_0 : i32, i32
  }
  func.func @transform_4(%arg0: i32) -> (i32, i32) {
    %c0_i32 = arith.constant 0 : i32
    %c0_i32_0 = arith.constant 0 : i32
    %c0_i32_1 = arith.constant 0 : i32
    return %c0_i32, %c0_i32_0 : i32, i32
  }
  func.func @transform_5(%arg0: i32) -> (i32, i32) {
    %c0_i32 = arith.constant 0 : i32
    %c0_i32_0 = arith.constant 0 : i32
    return %c0_i32, %arg0 : i32, i32
  }
}

</mosaic_0001>

<llo_original>
// kernel: tpu_custom_call.1
$region0: #{tpu_custom_call.1}
  #allocation0 [shape = 'u32[]', space=smem, size = 0x4, offset = 0x4, fixed_abs, tag = 'smem constant byte address 0x4 - core index']
  #allocation1 [shape = 'u32[144,128]{1,0:T(1,128)}', space=vmem, size = 0x12000, scoped, tag = 'internal scratch']
  %s0 = inlined_call_operand.hbm [shape: f32[2,128], index: 0, kind: input, shape index: {}]
  %s1 = inlined_call_operand.hbm [shape: bf16[4,128,128], index: 1, kind: input, shape index: {}]
  %s2 = inlined_call_operand.vmem [shape: f32[1,512], index: 2, kind: input, shape index: {}]
  %s3 = inlined_call_operand.vmem [shape: f32[1,128], index: 3, kind: input, shape index: {}]
  %s4 = inlined_call_operand.vmem [shape: f32[1,128], index: 4, kind: input, shape index: {}]
  %s5 = inlined_call_operand.hbm [shape: f32[2,512], index: 5, kind: output, shape index: {}]
  %s6 = sld [smem:[#allocation0]]
  $region61: #{tpu_custom_call.1} parent=0
    _
  %s8 = ssub.s32 1, %s6
  %s9 = scalar_select 0, %s8, %s6
  $region1: #{tpu_custom_call.1} parent=0
    #allocation2 [shape = 'u8[1024]{0}', space=vmem, size = 0x400, scoped, tag = 'input window, operand 0, single buffered']
    #allocation3 [shape = 's32[2]{0}', space=sflag, size = 0x8, scoped, tag = 'scoped memory for tpu_custom_call.1']
    #allocation4 [shape = 's32[2]{0}', space=sflag, size = 0x8, scoped, tag = 'scoped memory for tpu_custom_call.1']
    #allocation5 [shape = 'u8[131072]{0}', space=vmem, size = 0x20000, scoped, tag = 'input window, operand 1']
    #allocation6 [shape = 's32[2]{0}', space=sflag, size = 0x8, scoped, tag = 'scoped memory for tpu_custom_call.1']
    #allocation7 [shape = 'u8[4096]{0}', space=vmem, size = 0x1000, scoped, tag = 'output window, operand 0']
    %10 = vsyncpa [#allocation3], 0
    %11 = vsyncpa [#allocation6], 0
    %s12 = scalar_lea.sflag [#allocation6], 1
    %13 = vsyncpa %s12, 0
    %14 = vsyncpa [#allocation4], 0
    %s15 = scalar_lea.sflag [#allocation4], 1
    %16 = vsyncpa %s15, 0
    loop: start=0, step=1, limit=4
    $region2: #{tpu_custom_call.1} parent=1 // loop_pre_header
      _
    $region3: #{tpu_custom_call.1} parent=1 // loop_header
      %s18 = sphi 0, %s22
      %p19 = scmp.ge.s32.totalorder %s18, 4
      %s26 = sphi 0, %s26
      %s28 = sphi 0, %s26
      %s29 = sphi 0, %s28
      %s43 = sphi 0, %s29
      %s49 = sphi 0, %s51
      %s52 = sphi 0, %s49
      %s53 = sphi 0, %s52
      %s69 = sphi 0, %s53
      %s75 = sphi 0, %s77
      %s78 = sphi 0, %s75
      %s79 = sphi 0, %s78
      %s95 = sphi 0, %s79
      %s99 = sphi 0, %s99
      %s101 = sphi 0, %s99
      %s102 = sphi 0, %s101
      %s116 = sphi 0, %s102
      %s120 = sphi 0, %s120
      %s122 = sphi 0, %s120
      %s123 = sphi 0, %s122
      %s137 = sphi 0, %s123
      %s143 = sphi 0, %s145
      %s146 = sphi 0, %s143
      %s147 = sphi 0, %s146
      %s163 = sphi 0, %s147
    $region4: #{tpu_custom_call.1} parent=1 // loop_header_branch
      %21 = sbr.rel (%p19) target = $region8
    $region5: #{tpu_custom_call.1} parent=1 // loop_body
      %s23 = ssub.s32 %s18, 1
      %s24 = ssub.s32 %s18, 2
      %s25 = sadd.s32 %s18, 1
      %s27 = sadd.s32 %s26, 1
      %p30 = scmp.eq.s32.totalorder %s18, 1
      %p31 = scmp.ne.s32.totalorder %s26, %s28
      %p32 = scmp.eq.s32.totalorder %s18, 0
      %p33 = por %p31, %p32
      %p34 = scmp.ne.s32.totalorder %s26, %s28
      %p35 = scmp.eq.s32.totalorder %s23, 1
      %p36 = por %p34, %p35
      %p37 = scmp.ne.s32.totalorder %s28, %s29
      %p38 = scmp.eq.s32.totalorder %s23, 0
      %p39 = por %p37, %p38
      %p40 = scmp.ne.s32.totalorder %s28, %s29
      %p41 = scmp.eq.s32.totalorder %s24, 1
      %p42 = por %p40, %p41
      %p44 = scmp.ne.s32.totalorder %s29, %s43
      %p45 = scmp.eq.s32.totalorder %s24, 0
      %p46 = por %p44, %p45
      %s47 = ssub.s32 %s18, %s25
      %p48 = scmp.eq.s32.totalorder %s47, 0
      %s50 = sadd.s32 %s49, 1
      %s51 = scalar_select %p48, %s49, %s50
      %p54 = pneg %p48
      %p55 = scmp.eq.s32.totalorder %s18, 1
      %p56 = por %p54, %p55
      %p57 = scmp.ne.s32.totalorder %s49, %s52
      %p58 = scmp.eq.s32.totalorder %s18, 0
      %p59 = por %p57, %p58
      %p60 = scmp.ne.s32.totalorder %s49, %s52
      %p61 = scmp.eq.s32.totalorder %s23, 1
      %p62 = por %p60, %p61
      %p63 = scmp.ne.s32.totalorder %s52, %s53
      %p64 = scmp.eq.s32.totalorder %s23, 0
      %p65 = por %p63, %p64
      %p66 = scmp.ne.s32.totalorder %s52, %s53
      %p67 = scmp.eq.s32.totalorder %s24, 1
      %p68 = por %p66, %p67
      %p70 = scmp.ne.s32.totalorder %s53, %s69
      %p71 = scmp.eq.s32.totalorder %s24, 0
      %p72 = por %p70, %p71
      %s73 = ssub.s32 %s18, %s25
      %p74 = scmp.eq.s32.totalorder %s73, 0
      %s76 = sadd.s32 %s75, 1
      %s77 = scalar_select %p74, %s75, %s76
      %p80 = pneg %p74
      %p81 = scmp.eq.s32.totalorder %s18, 1
      %p82 = por %p80, %p81
      %p83 = scmp.ne.s32.totalorder %s75, %s78
      %p84 = scmp.eq.s32.totalorder %s18, 0
      %p85 = por %p83, %p84
      %p86 = scmp.ne.s32.totalorder %s75, %s78
      %p87 = scmp.eq.s32.totalorder %s23, 1
      %p88 = por %p86, %p87
      %p89 = scmp.ne.s32.totalorder %s78, %s79
      %p90 = scmp.eq.s32.totalorder %s23, 0
      %p91 = por %p89, %p90
      %p92 = scmp.ne.s32.totalorder %s78, %s79
      %p93 = scmp.eq.s32.totalorder %s24, 1
      %p94 = por %p92, %p93
      %p96 = scmp.ne.s32.totalorder %s79, %s95
      %p97 = scmp.eq.s32.totalorder %s24, 0
      %p98 = por %p96, %p97
      %s100 = sadd.s32 %s99, 1
      %p103 = scmp.eq.s32.totalorder %s18, 1
      %p104 = scmp.ne.s32.totalorder %s99, %s101
      %p105 = scmp.eq.s32.totalorder %s18, 0
      %p106 = por %p104, %p105
      %p107 = scmp.ne.s32.totalorder %s99, %s101
      %p108 = scmp.eq.s32.totalorder %s23, 1
      %p109 = por %p107, %p108
      %p110 = scmp.ne.s32.totalorder %s101, %s102
      %p111 = scmp.eq.s32.totalorder %s23, 0
      %p112 = por %p110, %p111
      %p113 = scmp.ne.s32.totalorder %s101, %s102
      %p114 = scmp.eq.s32.totalorder %s24, 1
      %p115 = por %p113, %p114
      %p117 = scmp.ne.s32.totalorder %s102, %s116
      %p118 = scmp.eq.s32.totalorder %s24, 0
      %p119 = por %p117, %p118
      %s121 = sadd.s32 %s120, 1
      %p124 = scmp.eq.s32.totalorder %s18, 1
      %p125 = scmp.ne.s32.totalorder %s120, %s122
      %p126 = scmp.eq.s32.totalorder %s18, 0
      %p127 = por %p125, %p126
      %p128 = scmp.ne.s32.totalorder %s120, %s122
      %p129 = scmp.eq.s32.totalorder %s23, 1
      %p130 = por %p128, %p129
      %p131 = scmp.ne.s32.totalorder %s122, %s123
      %p132 = scmp.eq.s32.totalorder %s23, 0
      %p133 = por %p131, %p132
      %p134 = scmp.ne.s32.totalorder %s122, %s123
      %p135 = scmp.eq.s32.totalorder %s24, 1
      %p136 = por %p134, %p135
      %p138 = scmp.ne.s32.totalorder %s123, %s137
      %p139 = scmp.eq.s32.totalorder %s24, 0
      %p140 = por %p138, %p139
      %s141 = ssub.s32 %s18, %s25
      %p142 = scmp.eq.s32.totalorder %s141, 0
      %s144 = sadd.s32 %s143, 1
      %s145 = scalar_select %p142, %s143, %s144
      %p148 = pneg %p142
      %p149 = scmp.eq.s32.totalorder %s18, 1
      %p150 = por %p148, %p149
      %p151 = scmp.ne.s32.totalorder %s143, %s146
      %p152 = scmp.eq.s32.totalorder %s18, 0
      %p153 = por %p151, %p152
      %p154 = scmp.ne.s32.totalorder %s143, %s146
      %p155 = scmp.eq.s32.totalorder %s23, 1
      %p156 = por %p154, %p155
      %p157 = scmp.ne.s32.totalorder %s146, %s147
      %p158 = scmp.eq.s32.totalorder %s23, 0
      %p159 = por %p157, %p158
      %p160 = scmp.ne.s32.totalorder %s146, %s147
      %p161 = scmp.eq.s32.totalorder %s24, 1
      %p162 = por %p160, %p161
      %p164 = scmp.ne.s32.totalorder %s147, %s163
      %p165 = scmp.eq.s32.totalorder %s24, 0
      %p166 = por %p164, %p165
      %p167 = scmp.le.s32.totalorder 1, %s18
      %p168 = scmp.lt.s32.totalorder %s18, 3
      %p169 = pnand %p167, %p168
      %p170 = pneg %p169
      // Predicated region
      $region9: #{tpu_custom_call.1} parent=5 // pred_check
        _
      $region10: #{tpu_custom_call.1} parent=5 // pred_check_branch
        %172 = sbr.rel (%p169) target = $region12
      $region11: #{tpu_custom_call.1} parent=5 // pred_region
        %s173 = ssub.s32 %s18, 1
        // Predicated region
        $region13: #{tpu_custom_call.1} parent=11 // pred_check
          %p174 = pneg %p39
        $region14: #{tpu_custom_call.1} parent=11 // pred_check_branch
          %176 = sbr.rel (%p174) target = $region16
        $region15: #{tpu_custom_call.1} parent=11 // pred_region
          %s178 = ssub.s32 32, 32
          %179 = vsyncadd [#allocation3], %s178
          %s181 = sshll.u32 [#allocation2], 4
          %s182 = int_to_ptr.vmem [resolvable:$true] %s181
          %184 = dma.hbm_to_vmem [thread:$0]  %s0, 32, %s182, [#allocation3]
        $region16: #{tpu_custom_call.1} parent=11 // pred_fallthru
          _
        // Predicated region
        $region17: #{tpu_custom_call.1} parent=11 // pred_check
          %p185 = pneg %p112
        $region18: #{tpu_custom_call.1} parent=11 // pred_check_branch
          %187 = sbr.rel (%p185) target = $region20
        $region19: #{tpu_custom_call.1} parent=11 // pred_region
          _
        $region20: #{tpu_custom_call.1} parent=11 // pred_fallthru
          _
        // Predicated region
        $region21: #{tpu_custom_call.1} parent=11 // pred_check
          %p188 = pneg %p133
        $region22: #{tpu_custom_call.1} parent=11 // pred_check_branch
          %190 = sbr.rel (%p188) target = $region24
        $region23: #{tpu_custom_call.1} parent=11 // pred_region
          _
        $region24: #{tpu_custom_call.1} parent=11 // pred_fallthru
          _
      $region12: #{tpu_custom_call.1} parent=5 // pred_fallthru
        _
      %p191 = scmp.lt.s32.totalorder %s18, 2
      // Predicated region
      $region25: #{tpu_custom_call.1} parent=5 // pred_check
        %p192 = pneg %p191
      $region26: #{tpu_custom_call.1} parent=5 // pred_check_branch
        %194 = sbr.rel (%p192) target = $region28
      $region27: #{tpu_custom_call.1} parent=5 // pred_region
        // Predicated region
        $region29: #{tpu_custom_call.1} parent=27 // pred_check
          %p195 = pneg %p59
        $region30: #{tpu_custom_call.1} parent=27 // pred_check_branch
          %197 = sbr.rel (%p195) target = $region32
        $region31: #{tpu_custom_call.1} parent=27 // pred_region
          %s198 = sand.u32 %s49, 1
          %s199 = scalar_lea.sflag [#allocation6], %s198
          %s200 = sand.u32 %s49, 1
          %s201 = smul.addr %s200, 128
          %s202 = scalar_lea.vmem [#allocation5], %s201
          %s203 = smul.u32 2, %s18
          %s205 = ssub.s32 2048, 2048
          %206 = vsyncadd %s199, %s205
          %s207 = smul.addr %s203, 16
          %s208 = smul.addr %s207, 64
          %s209 = scalar_lea.hbm %s1, %s208
          %s210 = sshll.u32 %s202, 4
          %s211 = int_to_ptr.vmem [resolvable:$true] %s210
          %216 = dma.hbm_to_vmem [thread:$0]  %s209, 2048, %s211, %s199, 64, 64, 4
        $region32: #{tpu_custom_call.1} parent=27 // pred_fallthru
          _
        // Predicated region
        $region33: #{tpu_custom_call.1} parent=27 // pred_check
          %p217 = pneg %p85
        $region34: #{tpu_custom_call.1} parent=27 // pred_check_branch
          %219 = sbr.rel (%p217) target = $region36
        $region35: #{tpu_custom_call.1} parent=27 // pred_region
          %s220 = smul.u32 2, %s18
          %p221 = scmp.lt.s32.totalorder %s220, 3
          %s222 = scalar_select %p221, %s220, 3
          %s223 = scalar_lea.vmem %s2, %s222
          %s224 = smul.u32 2, %s18
        $region36: #{tpu_custom_call.1} parent=27 // pred_fallthru
          _
      $region28: #{tpu_custom_call.1} parent=5 // pred_fallthru
        _
      %p225 = scmp.le.s32.totalorder 1, %s18
      %p226 = scmp.lt.s32.totalorder %s18, 3
      %p227 = pnand %p225, %p226
      %p228 = pneg %p227
      // Predicated region
      $region37: #{tpu_custom_call.1} parent=5 // pred_check
        _
      $region38: #{tpu_custom_call.1} parent=5 // pred_check_branch
        %230 = sbr.rel (%p227) target = $region40
      $region39: #{tpu_custom_call.1} parent=5 // pred_region
        %s231 = ssub.s32 %s18, 1
        // Predicated region
        $region41: #{tpu_custom_call.1} parent=39 // pred_check
          %p232 = pneg %p39
        $region42: #{tpu_custom_call.1} parent=39 // pred_check_branch
          %234 = sbr.rel (%p232) target = $region44
        $region43: #{tpu_custom_call.1} parent=39 // pred_region
          %235 = dma.done [#allocation3], 32
        $region44: #{tpu_custom_call.1} parent=39 // pred_fallthru
          _
        %s236 = sand.u32 %s52, 1
        %s237 = scalar_lea.sflag [#allocation6], %s236
        %s238 = sand.u32 %s52, 1
        %s239 = smul.addr %s238, 128
        %s240 = scalar_lea.vmem [#allocation5], %s239
        // Predicated region
        $region45: #{tpu_custom_call.1} parent=39 // pred_check
          %p241 = pneg %p65
        $region46: #{tpu_custom_call.1} parent=39 // pred_check_branch
          %243 = sbr.rel (%p241) target = $region48
        $region47: #{tpu_custom_call.1} parent=39 // pred_region
          %244 = dma.done %s237, 2048
        $region48: #{tpu_custom_call.1} parent=39 // pred_fallthru
          _
        %p245 = pneg %p39
        %p246 = pneg %p36
        %s247 = sand.u32 %s52, 1
        %s248 = scalar_lea.sflag [#allocation6], %s247
        %s249 = sand.u32 %s52, 1
        %s250 = smul.addr %s249, 128
        %s251 = scalar_lea.vmem [#allocation5], %s250
        %p252 = pneg %p65
        %p253 = pneg %p62
        %s254 = smul.u32 2, %s23
        %p255 = scmp.lt.s32.totalorder %s254, 3
        %s256 = scalar_select %p255, %s254, 3
        %s257 = scalar_lea.vmem %s2, %s256
        %p258 = pneg %p91
        %p259 = pneg %p88
        %p260 = pneg %p112
        %p261 = pneg %p109
        %p262 = pneg %p133
        %p263 = pneg %p130
        %p264 = pneg %p159
        %p265 = pneg %p156
        %s266 = sand.u32 %s146, 1
        %s267 = scalar_lea.sflag [#allocation4], %s266
        %s268 = sand.u32 %s146, 1
        %s269 = smul.addr %s268, 4
        %s270 = scalar_lea.vmem [#allocation7], %s269
        %s271 = smul.u32 2, %s23
        %s272 = smul.u32 2, %s23
        %p273 = scmp.lt.s32.totalorder %s272, 3
        %s274 = scalar_select %p273, %s272, 3
        %s275 = scalar_lea.vmem %s2, %s274
        %s276 = smul.u32 2, %s23
        %s277 = smul.u32 2, %s23
        %v279 = vld [vmem:[#allocation2] sm:$0x3]
        %v280 = vpack.c.bf16 %v279, %v279
        %v281 = vld [vmem:[%s3] sm:$0x1]
        %v282 = vld [vmem:[%s4] sm:$0x1]
        %v283 = vld [vmem:[%s240] sm:$0xf]
        %v284 = vld [vmem:[%s240 + $0x4] sm:$0xf]
        %v285 = vld [vmem:[%s240 + $0x8] sm:$0xf]
        %v286 = vld [vmem:[%s240 + $0xc] sm:$0xf]
        %v287 = vld [vmem:[%s240 + $0x10] sm:$0xf]
        %v288 = vld [vmem:[%s240 + $0x14] sm:$0xf]
        %v289 = vld [vmem:[%s240 + $0x18] sm:$0xf]
        %v290 = vld [vmem:[%s240 + $0x1c] sm:$0xf]
        %v291 = vld [vmem:[%s240 + $0x20] sm:$0xf]
        %v292 = vld [vmem:[%s240 + $0x24] sm:$0xf]
        %v293 = vld [vmem:[%s240 + $0x28] sm:$0xf]
        %v294 = vld [vmem:[%s240 + $0x2c] sm:$0xf]
        %v295 = vld [vmem:[%s240 + $0x30] sm:$0xf]
        %v296 = vld [vmem:[%s240 + $0x34] sm:$0xf]
        %v297 = vld [vmem:[%s240 + $0x38] sm:$0xf]
        %v298 = vld [vmem:[%s240 + $0x3c] sm:$0xf]
        %v299 = vld [vmem:[%s275] sm:$0x1]
        %v301 = vlaneseq
        %v302 = vshrl.u32 %v301, 7
        %v303 = vsub.s32 0, %v302
        %v304 = vrot.slane %v299, %v303
        %v322 = vunpack.c.l.b16 %v283
        %v323 = vunpack.c.l.b16 %v284
        %v324 = vunpack.c.l.b16 %v285
        %v325 = vunpack.c.l.b16 %v286
        %v326 = vunpack.c.l.b16 %v287
        %v327 = vunpack.c.l.b16 %v288
        %v328 = vunpack.c.l.b16 %v289
        %v329 = vunpack.c.l.b16 %v290
        %v330 = vunpack.c.l.b16 %v291
        %v331 = vunpack.c.l.b16 %v292
        %v332 = vunpack.c.l.b16 %v293
        %v333 = vunpack.c.l.b16 %v294
        %v334 = vunpack.c.l.b16 %v295
        %v335 = vunpack.c.l.b16 %v296
        %v336 = vunpack.c.l.b16 %v297
        %v337 = vunpack.c.l.b16 %v298
        %v338 = vpack.c.b16 %v323, %v322
        %v339 = vpack.c.b16 %v325, %v324
        %v340 = vpack.c.b16 %v327, %v326
        %v341 = vpack.c.b16 %v329, %v328
        %v342 = vpack.c.b16 %v331, %v330
        %v343 = vpack.c.b16 %v333, %v332
        %v344 = vpack.c.b16 %v335, %v334
        %v345 = vpack.c.b16 %v337, %v336
        %354 = vmatprep.subr.bf16.mxu0 0
        %355 = vmatpush1.bf16.msra.mxu0 %v338
        %356 = vmatprep.subr.bf16.mxu0 0
        %357 = vmatpush1.bf16.msra.mxu0 %v339
        %358 = vmatprep.subr.bf16.mxu0 0
        %359 = vmatpush1.bf16.msra.mxu0 %v340
        %360 = vmatprep.subr.bf16.mxu0 0
        %361 = vmatpush1.bf16.msra.mxu0 %v341
        %362 = vmatprep.subr.bf16.mxu0 0
        %363 = vmatpush1.bf16.msra.mxu0 %v342
        %364 = vmatprep.subr.bf16.mxu0 0
        %365 = vmatpush1.bf16.msra.mxu0 %v343
        %366 = vmatprep.subr.bf16.mxu0 0
        %367 = vmatpush1.bf16.msra.mxu0 %v344
        %368 = vmatprep.subr.bf16.mxu0 0
        %369 = vmatpush1.bf16.msra.mxu0 %v345
        %370 = vmatprep.subr.bf16.mxu0 0
        %371 = vmatpush1.bf16.msra.mxu0 0
        %372 = vmatprep.subr.bf16.mxu0 0
        %373 = vmatpush1.bf16.msra.mxu0 0
        %374 = vmatprep.subr.bf16.mxu0 0
        %375 = vmatpush1.bf16.msra.mxu0 0
        %376 = vmatprep.subr.bf16.mxu0 0
        %377 = vmatpush1.bf16.msra.mxu0 0
        %378 = vmatprep.subr.bf16.mxu0 0
        %379 = vmatpush1.bf16.msra.mxu0 0
        %380 = vmatprep.subr.bf16.mxu0 0
        %381 = vmatpush1.bf16.msra.mxu0 0
        %382 = vmatprep.subr.bf16.mxu0 0
        %383 = vmatpush1.bf16.msra.mxu0 0
        %384 = vmatprep.subr.bf16.mxu0 0
        %385 = vmatpush1.bf16.msra.mxu0 0
        %386 = vmatprep.mubr.bf16.mxu0 0
        %387 = vmatmul.mubr.bf16.gmra.mrb[0].mxu0 %v280
        %v388 = vpop.f32.mrb[0].mxu0
        %v389 = vadd.f32 %v304, %v388
        %v390 = vpop.f32.mrb[0].mxu0
        %v391 = vpop.f32.mrb[0].mxu0
        %v392 = vpop.f32.mrb[0].mxu0
        %393 = vdwg.mxu0
        %vm394 = vcmask 1041408
        %v395 = vsel %vm394, %v389, 0.0
        %396 = vadd.xlane.f32.xlu0 %v395
        %v397 = vpop.xlane.xlu0 %396
        %v398 = vrcp.pop 128.0
        %v399 = vmul.f32 %v397, %v398
        %v400 = vsub.f32 %v389, %v399
        %v401 = vmul.f32 %v400, %v400
        %v402 = vsel %vm394, %v401, 0.0
        %403 = vadd.xlane.f32.xlu0 %v402
        %v404 = vpop.xlane.xlu0 %403
        %v405 = vmul.f32 %v404, %v398
        %v406 = vadd.f32 %v405, 1e-05
        %v407 = vrsqrt.pop %v406
        %v408 = vmul.f32 %v400, %v407
        %v410 = vlaneseq
        %v411 = vshrl.u32 %v410, 7
        %v412 = vsub.s32 0, %v411
        %v413 = vrot.slane %v281, %v412
        %v415 = vmul.f32 %v408, %v413
        %v417 = vlaneseq
        %v418 = vshrl.u32 %v417, 7
        %v419 = vsub.s32 0, %v418
        %v420 = vrot.slane %v282, %v419
        %v422 = vadd.f32 %v415, %v420
        %423 = vst [vmem:[%s270] sm:$0x3] %v422
        %s424 = scalar_lea.vmem %s240, 64 [#allocation5]
        %v425 = vld [vmem:[%s424] sm:$0xf]
        %v426 = vld [vmem:[%s424 + $0x4] sm:$0xf]
        %v427 = vld [vmem:[%s424 + $0x8] sm:$0xf]
        %v428 = vld [vmem:[%s424 + $0xc] sm:$0xf]
        %v429 = vld [vmem:[%s424 + $0x10] sm:$0xf]
        %v430 = vld [vmem:[%s424 + $0x14] sm:$0xf]
        %v431 = vld [vmem:[%s424 + $0x18] sm:$0xf]
        %v432 = vld [vmem:[%s424 + $0x1c] sm:$0xf]
        %v433 = vld [vmem:[%s424 + $0x20] sm:$0xf]
        %v434 = vld [vmem:[%s424 + $0x24] sm:$0xf]
        %v435 = vld [vmem:[%s424 + $0x28] sm:$0xf]
        %v436 = vld [vmem:[%s424 + $0x2c] sm:$0xf]
        %v437 = vld [vmem:[%s424 + $0x30] sm:$0xf]
        %v438 = vld [vmem:[%s424 + $0x34] sm:$0xf]
        %v439 = vld [vmem:[%s424 + $0x38] sm:$0xf]
        %v440 = vld [vmem:[%s424 + $0x3c] sm:$0xf]
        %v441 = vld [vmem:[%s275 + $0x1] sm:$0x1]
        %v443 = vlaneseq
        %v444 = vshrl.u32 %v443, 7
        %v445 = vsub.s32 0, %v444
        %v446 = vrot.slane %v441, %v445
        %v464 = vunpack.c.l.b16 %v425
        %v465 = vunpack.c.l.b16 %v426
        %v466 = vunpack.c.l.b16 %v427
        %v467 = vunpack.c.l.b16 %v428
        %v468 = vunpack.c.l.b16 %v429
        %v469 = vunpack.c.l.b16 %v430
        %v470 = vunpack.c.l.b16 %v431
        %v471 = vunpack.c.l.b16 %v432
        %v472 = vunpack.c.l.b16 %v433
        %v473 = vunpack.c.l.b16 %v434
        %v474 = vunpack.c.l.b16 %v435
        %v475 = vunpack.c.l.b16 %v436
        %v476 = vunpack.c.l.b16 %v437
        %v477 = vunpack.c.l.b16 %v438
        %v478 = vunpack.c.l.b16 %v439
        %v479 = vunpack.c.l.b16 %v440
        %v480 = vpack.c.b16 %v465, %v464
        %v481 = vpack.c.b16 %v467, %v466
        %v482 = vpack.c.b16 %v469, %v468
        %v483 = vpack.c.b16 %v471, %v470
        %v484 = vpack.c.b16 %v473, %v472
        %v485 = vpack.c.b16 %v475, %v474
        %v486 = vpack.c.b16 %v477, %v476
        %v487 = vpack.c.b16 %v479, %v478
        %496 = vmatprep.subr.bf16.mxu0 0
        %497 = vmatpush1.bf16.msra.mxu0 %v480
        %498 = vmatprep.subr.bf16.mxu0 0
        %499 = vmatpush1.bf16.msra.mxu0 %v481
        %500 = vmatprep.subr.bf16.mxu0 0
        %501 = vmatpush1.bf16.msra.mxu0 %v482
        %502 = vmatprep.subr.bf16.mxu0 0
        %503 = vmatpush1.bf16.msra.mxu0 %v483
        %504 = vmatprep.subr.bf16.mxu0 0
        %505 = vmatpush1.bf16.msra.mxu0 %v484
        %506 = vmatprep.subr.bf16.mxu0 0
        %507 = vmatpush1.bf16.msra.mxu0 %v485
        %508 = vmatprep.subr.bf16.mxu0 0
        %509 = vmatpush1.bf16.msra.mxu0 %v486
        %510 = vmatprep.subr.bf16.mxu0 0
        %511 = vmatpush1.bf16.msra.mxu0 %v487
        %512 = vmatprep.subr.bf16.mxu0 0
        %513 = vmatpush1.bf16.msra.mxu0 0
        %514 = vmatprep.subr.bf16.mxu0 0
        %515 = vmatpush1.bf16.msra.mxu0 0
        %516 = vmatprep.subr.bf16.mxu0 0
        %517 = vmatpush1.bf16.msra.mxu0 0
        %518 = vmatprep.subr.bf16.mxu0 0
        %519 = vmatpush1.bf16.msra.mxu0 0
        %520 = vmatprep.subr.bf16.mxu0 0
        %521 = vmatpush1.bf16.msra.mxu0 0
        %522 = vmatprep.subr.bf16.mxu0 0
        %523 = vmatpush1.bf16.msra.mxu0 0
        %524 = vmatprep.subr.bf16.mxu0 0
        %525 = vmatpush1.bf16.msra.mxu0 0
        %526 = vmatprep.subr.bf16.mxu0 0
        %527 = vmatpush1.bf16.msra.mxu0 0
        %528 = vmatprep.mubr.bf16.mxu0 0
        %529 = vmatmul.mubr.bf16.gmra.mrb[0].mxu0 %v280
        %v530 = vpop.f32.mrb[0].mxu0
        %v531 = vadd.f32 %v446, %v530
        %v532 = vpop.f32.mrb[0].mxu0
        %v533 = vpop.f32.mrb[0].mxu0
        %v534 = vpop.f32.mrb[0].mxu0
        %535 = vdwg.mxu0
        %v536 = vsel %vm394, %v531, 0.0
        %537 = vadd.xlane.f32.xlu0 %v536
        %v538 = vpop.xlane.xlu0 %537
        %v539 = vmul.f32 %v538, %v398
        %v540 = vsub.f32 %v531, %v539
        %v541 = vmul.f32 %v540, %v540
        %v542 = vsel %vm394, %v541, 0.0
        %543 = vadd.xlane.f32.xlu0 %v542
        %v544 = vpop.xlane.xlu0 %543
        %v545 = vmul.f32 %v544, %v398
        %v546 = vadd.f32 %v545, 1e-05
        %v547 = vrsqrt.pop %v546
        %v548 = vmul.f32 %v540, %v547
        %v549 = vmul.f32 %v548, %v413
        %v550 = vadd.f32 %v549, %v420
        %551 = vst [vmem:[%s270 + $0x2] sm:$0x3] %v550
        %s552 = sand.u32 %s146, 1
        %s553 = scalar_lea.sflag [#allocation4], %s552
        %s554 = sand.u32 %s146, 1
        %s555 = smul.addr %s554, 4
        %s556 = scalar_lea.vmem [#allocation7], %s555
        // Predicated region
        $region49: #{tpu_custom_call.1} parent=39 // pred_check
          %p557 = pneg %p156
        $region50: #{tpu_custom_call.1} parent=39 // pred_check_branch
          %559 = sbr.rel (%p557) target = $region52
        $region51: #{tpu_custom_call.1} parent=39 // pred_region
          %s560 = smul.u32 2, %s23
          %s562 = ssub.s32 64, 64
          %563 = vsyncadd %s553, %s562
          %s564 = smul.addr %s560, 32
          %s565 = scalar_lea.hbm %s5, %s564
          %s567 = sshll.u32 %s556, 4
          %s568 = int_to_ptr.vmem [resolvable:$true] %s567
          %570 = dma.vmem_to_hbm [thread:$0]  %s568, 64, %s565, %s553
        $region52: #{tpu_custom_call.1} parent=39 // pred_fallthru
          _
      $region40: #{tpu_custom_call.1} parent=5 // pred_fallthru
        _
      %p571 = scmp.le.s32.totalorder 2, %s18
      // Predicated region
      $region53: #{tpu_custom_call.1} parent=5 // pred_check
        %p572 = pneg %p571
      $region54: #{tpu_custom_call.1} parent=5 // pred_check_branch
        %574 = sbr.rel (%p572) target = $region56
      $region55: #{tpu_custom_call.1} parent=5 // pred_region
        %s575 = ssub.s32 %s18, 2
        // Predicated region
        $region57: #{tpu_custom_call.1} parent=55 // pred_check
          %p576 = pneg %p162
        $region58: #{tpu_custom_call.1} parent=55 // pred_check_branch
          %578 = sbr.rel (%p576) target = $region60
        $region59: #{tpu_custom_call.1} parent=55 // pred_region
          %s579 = sand.u32 %s147, 1
          %s580 = scalar_lea.sflag [#allocation4], %s579
          %s581 = sand.u32 %s147, 1
          %s582 = smul.addr %s581, 4
          %s583 = scalar_lea.vmem [#allocation7], %s582
          %584 = dma.done %s580, 64
        $region60: #{tpu_custom_call.1} parent=55 // pred_fallthru
          _
      $region56: #{tpu_custom_call.1} parent=5 // pred_fallthru
        _
    $region6: #{tpu_custom_call.1} parent=1 // loop_footer
      %s22 = sadd.s32 1, %s18
    $region7: #{tpu_custom_call.1} parent=1 // loop_footer_branch
      %17 = sbr.rel target = $region3
    $region8: #{tpu_custom_call.1} parent=1 // loop_exit
      _
    %585 = vsyncpa [#allocation3], 1
    %s586 = scalar_lea.sflag [#allocation3], 1
    %587 = vsyncpa %s586, 1
    %588 = vsyncpa [#allocation6], 1
    %s589 = scalar_lea.sflag [#allocation6], 1
    %590 = vsyncpa %s589, 1
    %591 = vsyncpa [#allocation4], 1
    %s592 = scalar_lea.sflag [#allocation4], 1
    %593 = vsyncpa %s592, 1

</llo_original>
